<compile_context>
chip_gen: v6e
topology: v6e:2x2x1
jax: 0.10.0
libtpu: 0.0.40
codegen_flags: <defaults>
</compile_context>

<pallas_src>
import jax
import jax.numpy as jnp
from jax.experimental import pallas as pl
from jax.experimental.pallas import tpu as pltpu

TARGETS = ("QOE", "CHONGHE", "FUFEI")


def _round_up(x, m):
    return ((x + m - 1) // m) * m


# ----------------------------------------------------------------------------
# Fused Pallas kernel: all three SE heads as one lane-packed SE block.
#   xq/xc/xf  : (TB, C_t)        raw per-target inputs (unpadded widths)
#   w1t_ref   : (C_PAD, CR_PAD)  block-diagonal, pre-transposed W1^T
#   w2t_ref   : (CR_PAD, C_PAD)  block-diagonal, pre-transposed W2^T
#   gate_ref  : (TB, C_PAD)      sigmoid gates (lane-packed)
#   scaled_ref: (TB, C_PAD)      x * gate      (lane-packed)
#   xpack_ref : VMEM scratch (TB, C_PAD) used to assemble the packed input
# ----------------------------------------------------------------------------
def _fused_se_kernel(xq_ref, xc_ref, xf_ref, w1t_ref, w2t_ref,
                     gate_ref, scaled_ref, xpack_ref):
    cq = xq_ref.shape[1]
    cc = xc_ref.shape[1]
    cf = xf_ref.shape[1]
    # Assemble the lane-packed input in VMEM; zero-fill so the padded lanes
    # feed zero rows of the block-diagonal weights (exact).
    xpack_ref[...] = jnp.zeros_like(xpack_ref)
    xpack_ref[:, 0:cq] = xq_ref[...].astype(jnp.float32)
    xpack_ref[:, cq:cq + cc] = xc_ref[...].astype(jnp.float32)
    xpack_ref[:, cq + cc:cq + cc + cf] = xf_ref[...].astype(jnp.float32)
    x = xpack_ref[...]                                          # (TB, C_PAD)
    # "squeeze": avg-pool over the length-1 trailing axis == identity.
    h = jnp.dot(x, w1t_ref[...], preferred_element_type=jnp.float32)
    h = jnp.maximum(h, 0.0)                                      # ReLU
    gate = jax.nn.sigmoid(
        jnp.dot(h, w2t_ref[...], preferred_element_type=jnp.float32))
    gate_ref[...] = gate.astype(gate_ref.dtype)                  # 128-lane store
    scaled_ref[...] = (x * gate).astype(scaled_ref.dtype)        # 128-lane store


def _choose_batch_tile(batch):
    """Pick a batch tile so the grid has >=4 steps, ideally an even count
    (so v7x's two TensorCores each get >=2 pipelined steps).  Returns None
    for small batches (grid-less whole-array VMEM path)."""
    if batch <= 1024:
        return None
    fallback = None
    for tile in (2048, 1024, 512, 256, 128):
        n = -(-batch // tile)                     # ceil-div
        if n >= 4 and n % 2 == 0:
            return tile
        if fallback is None and n >= 4:
            fallback = tile
    return fallback if fallback is not None else 128


def fused_se_forward(xq, xc, xf, w1t, w2t, *, out_dtype=None, batch_tile=None):
    """xq/xc/xf: (B, C_t) unpadded; w1t: (C_PAD, CR_PAD); w2t: (CR_PAD, C_PAD).
    Returns (gate_packed, scaled_packed), each (B, C_PAD)."""
    batch = xq.shape[0]
    c_pad, cr_pad = w1t.shape
    if out_dtype is None:
        out_dtype = xq.dtype
    out_shape = (jax.ShapeDtypeStruct((batch, c_pad), out_dtype),
                 jax.ShapeDtypeStruct((batch, c_pad), out_dtype))

    if batch_tile is None:
        batch_tile = _choose_batch_tile(batch)

    if batch_tile is None:
        # Small-batch path: no grid, whole arrays VMEM-resident (one DMA per
        # operand, no pipelining scaffolding).  Never used for large B.
        vmem = pl.BlockSpec(memory_space=pltpu.MemorySpace.VMEM)
        return pl.pallas_call(
            _fused_se_kernel,
            out_shape=out_shape,
            in_specs=[vmem] * 5,
            out_specs=(vmem, vmem),
            scratch_shapes=[pltpu.VMEM((batch, c_pad), jnp.float32)],
        )(xq, xc, xf, w1t, w2t)

    # Production path: pl.cdiv grid over sublane-aligned batch tiles (the
    # final partial block, if any, is masked by Pallas), tiny block-diagonal
    # weights kept VMEM-resident across steps, batch axis sharded across
    # TensorCores.  Per-step VMEM at tile=2048 is ~4.6 MiB double-buffered,
    # well under the 16 MiB v5e scoped default -> no vmem_limit_bytes needed.
    grid = (pl.cdiv(batch, batch_tile),)
    return pl.pallas_call(
        _fused_se_kernel,
        out_shape=out_shape,
        grid=grid,
        in_specs=[
            pl.BlockSpec((batch_tile, xq.shape[1]), lambda i: (i, 0)),
            pl.BlockSpec((batch_tile, xc.shape[1]), lambda i: (i, 0)),
            pl.BlockSpec((batch_tile, xf.shape[1]), lambda i: (i, 0)),
            pl.BlockSpec((c_pad, cr_pad), lambda i: (0, 0)),
            pl.BlockSpec((cr_pad, c_pad), lambda i: (0, 0)),
        ],
        out_specs=[
            pl.BlockSpec((batch_tile, c_pad), lambda i: (i, 0)),
            pl.BlockSpec((batch_tile, c_pad), lambda i: (i, 0)),
        ],
        scratch_shapes=[pltpu.VMEM((batch_tile, c_pad), jnp.float32)],
        compiler_params=pltpu.CompilerParams(
            dimension_semantics=("parallel",)),
    )(xq, xc, xf, w1t, w2t)


# ----------------------------------------------------------------------------
# Parameter init (bias-free Linear layers, nn.Linear-style range) + packing
# ----------------------------------------------------------------------------
def init_se_params(key, channels, reduction=2):
    cr = max(channels // reduction, 1)
    k1, k2 = jax.random.split(key)
    bound1 = 1.0 / (channels ** 0.5)
    bound2 = 1.0 / (cr ** 0.5)
    w1 = jax.random.uniform(k1, (cr, channels), jnp.float32, -bound1, bound1)
    w2 = jax.random.uniform(k2, (channels, cr), jnp.float32, -bound2, bound2)
    return {"w1": w1, "w2": w2}


def pack_target_dim_scaling_params(params):
    """One-time packing: transpose + zero-pad the 3 SE heads into
    block-diagonal lane-packed weight matrices."""
    channels = tuple(int(params[t]["w2"].shape[0]) for t in TARGETS)
    crs = tuple(int(params[t]["w1"].shape[0]) for t in TARGETS)
    c_tot = sum(channels)
    cr_tot = sum(crs)
    c_pad = _round_up(c_tot, 128)     # lane-dense packed channel width
    cr_pad = _round_up(cr_tot, 8)     # minimum sublane-aligned hidden width

    w1t = jnp.zeros((c_pad, cr_pad), jnp.float32)
    w2t = jnp.zeros((cr_pad, c_pad), jnp.float32)
    c_off, cr_off = 0, 0
    for t, c, cr in zip(TARGETS, channels, crs):
        w1 = params[t]["w1"].astype(jnp.float32)    # (Cr, C)
        w2 = params[t]["w2"].astype(jnp.float32)    # (C, Cr)
        w1t = w1t.at[c_off:c_off + c, cr_off:cr_off + cr].set(w1.T)
        w2t = w2t.at[cr_off:cr_off + cr, c_off:c_off + c].set(w2.T)
        c_off += c
        cr_off += cr

    return {"w1t": w1t, "w2t": w2t, "channels": channels, "crs": crs,
            "c_pad": c_pad, "cr_pad": cr_pad}


# ----------------------------------------------------------------------------
# TargetDimScalingLayer forward (glue + single fused kernel call)
# ----------------------------------------------------------------------------
def target_dim_scaling_forward(packed,
                               target_QOE_vec,       # (B, 1, C_qoe)
                               target_CHONGHE_vec,   # (B, 1, C_ch)
                               target_FUFEI_vec,     # (B, 1, C_ff)
                               mask=None):
    # `mask` is accepted but unused — matches the PyTorch forward().
    xs = (target_QOE_vec, target_CHONGHE_vec, target_FUFEI_vec)
    channels = packed["channels"]
    batch = xs[0].shape[0]

    # squeeze(dim=1): (B, 1, C) -> (B, C).  No HBM pad/stack — the kernel
    # assembles the lane-packed layout in VMEM.
    x2d = [x.reshape(batch, c) for x, c in zip(xs, channels)]

    gate_packed, scaled_packed = fused_se_forward(
        x2d[0], x2d[1], x2d[2], packed["w1t"], packed["w2t"])

    # Cheap contiguous lane slices off the single packed (B, C_PAD) slabs,
    # then restore the trailing length-1 axis -> (B, C_t, 1).
    weights, scaleds = [], []
    off = 0
    for c in channels:
        weights.append(gate_packed[:, off:off + c].reshape(batch, c, 1))
        scaleds.append(scaled_packed[:, off:off + c].reshape(batch, c, 1))
        off += c

    weight_result = {
        "se_QOE_weight": weights[0],
        "se_CHONGHE_weight": weights[1],
        "se_FUFEI_weight": weights[2],
    }
    return weight_result, scaleds[0], scaleds[1], scaleds[2]


# ----------------------------------------------------------------------------
# Pure-JAX reference (high-precision) for numerical checks
# ----------------------------------------------------------------------------
def _se_reference(x2d, w1, w2):
    h = jnp.maximum(
        jnp.dot(x2d, w1.T, precision=jax.lax.Precision.HIGHEST), 0.0)
    gate = jax.nn.sigmoid(
        jnp.dot(h, w2.T, precision=jax.lax.Precision.HIGHEST))
    return gate, x2d * gate


if __name__ == "__main__":
    # channel counts = (#continue + #discrete) features per target dimension
    C_QOE, C_CHONGHE, C_FUFEI = 16, 12, 8
    B = 2

    root = jax.random.PRNGKey(0)
    k_params, k_q, k_c, k_f = jax.random.split(root, 4)
    kq, kc, kf = jax.random.split(k_params, 3)

    params = {
        "QOE": init_se_params(kq, C_QOE),
        "CHONGHE": init_se_params(kc, C_CHONGHE),
        "FUFEI": init_se_params(kf, C_FUFEI),
    }
    packed = pack_target_dim_scaling_params(params)

    # module inputs arrive as (B, 1, C) — matching the squeeze(dim=1) in forward
    target_QOE_vec = jax.random.normal(k_q, (B, 1, C_QOE), jnp.float32)
    target_CHONGHE_vec = jax.random.normal(k_c, (B, 1, C_CHONGHE), jnp.float32)
    target_FUFEI_vec = jax.random.normal(k_f, (B, 1, C_FUFEI), jnp.float32)

    fwd = jax.jit(lambda q, c, f: target_dim_scaling_forward(packed, q, c, f))
    weights, se_qoe, se_ch, se_ff = fwd(
        target_QOE_vec, target_CHONGHE_vec, target_FUFEI_vec)
    jax.block_until_ready((weights, se_qoe, se_ch, se_ff))

    # shape checks (match PyTorch (B, C, 1) outputs)
    assert weights["se_QOE_weight"].shape == (B, C_QOE, 1)
    assert weights["se_CHONGHE_weight"].shape == (B, C_CHONGHE, 1)
    assert weights["se_FUFEI_weight"].shape == (B, C_FUFEI, 1)
    assert se_qoe.shape == (B, C_QOE, 1)
    assert se_ch.shape == (B, C_CHONGHE, 1)
    assert se_ff.shape == (B, C_FUFEI, 1)

    # numerical check vs pure-JAX reference (block-diag packing is exact)
    ref_inputs = {
        "QOE": target_QOE_vec.reshape(B, C_QOE),
        "CHONGHE": target_CHONGHE_vec.reshape(B, C_CHONGHE),
        "FUFEI": target_FUFEI_vec.reshape(B, C_FUFEI),
    }
    got_w = {
        "QOE": weights["se_QOE_weight"][..., 0],
        "CHONGHE": weights["se_CHONGHE_weight"][..., 0],
        "FUFEI": weights["se_FUFEI_weight"][..., 0],
    }
    got_s = {"QOE": se_qoe[..., 0], "CHONGHE": se_ch[..., 0],
             "FUFEI": se_ff[..., 0]}
    for t in TARGETS:
        ref_gate, ref_scaled = _se_reference(
            ref_inputs[t], params[t]["w1"], params[t]["w2"])
        assert jnp.allclose(got_w[t], ref_gate, atol=1e-5, rtol=1e-5)
        assert jnp.allclose(got_s[t], ref_scaled, atol=1e-5, rtol=1e-5)

    print("KERNEL_OK")
</pallas_src>

<mosaic_0001>
module attributes {stable_mosaic.version = 11 : i64} {
  func.func @_fused_se_kernel(%arg0: memref<2x16xf32, #tpu.memory_space<vmem>>, %arg1: memref<2x12xf32, #tpu.memory_space<vmem>>, %arg2: memref<2x8xf32, #tpu.memory_space<vmem>>, %arg3: memref<128x24xf32, #tpu.memory_space<vmem>>, %arg4: memref<24x128xf32, #tpu.memory_space<vmem>>, %arg5: memref<2x128xf32, #tpu.memory_space<vmem>>, %arg6: memref<2x128xf32, #tpu.memory_space<vmem>>, %arg7: memref<2x128xf32, #tpu.memory_space<vmem>>) attributes {dimension_semantics = [], scalar_prefetch = 0 : i64, scratch_operands = 1 : i64, tpu.core_type = #tpu.core_type<tc>} {
    %cst = arith.constant 0.000000e+00 : f32
    %0 = vector.broadcast %cst : f32 to vector<2x128xf32>
    %c0 = arith.constant 0 : index
    %c0_0 = arith.constant 0 : index
    %1 = vector.load %arg7[%c0, %c0_0] : memref<2x128xf32, #tpu.memory_space<vmem>>, vector<2x128xf32>
    tpu.vector_store %arg7[%c0, %c0_0], %0 {strides = array<i32>} : memref<2x128xf32, #tpu.memory_space<vmem>>, vector<2x128xf32>,
    %c0_1 = arith.constant 0 : index
    %c0_2 = arith.constant 0 : index
    %2 = vector.load %arg0[%c0_1, %c0_2] : memref<2x16xf32, #tpu.memory_space<vmem>>, vector<2x16xf32>
    %c0_3 = arith.constant 0 : index
    %c0_4 = arith.constant 0 : index
    %3 = vector.load %arg7[%c0_3, %c0_4] : memref<2x128xf32, #tpu.memory_space<vmem>>, vector<2x16xf32>
    tpu.vector_store %arg7[%c0_3, %c0_4], %2 {strides = array<i32>} : memref<2x128xf32, #tpu.memory_space<vmem>>, vector<2x16xf32>,
    %c0_5 = arith.constant 0 : index
    %c0_6 = arith.constant 0 : index
    %4 = vector.load %arg1[%c0_5, %c0_6] : memref<2x12xf32, #tpu.memory_space<vmem>>, vector<2x12xf32>
    %c0_7 = arith.constant 0 : index
    %c16 = arith.constant 16 : index
    %5 = vector.load %arg7[%c0_7, %c16] : memref<2x128xf32, #tpu.memory_space<vmem>>, vector<2x12xf32>
    tpu.vector_store %arg7[%c0_7, %c16], %4 {strides = array<i32>} : memref<2x128xf32, #tpu.memory_space<vmem>>, vector<2x12xf32>,
    %c0_8 = arith.constant 0 : index
    %c0_9 = arith.constant 0 : index
    %6 = vector.load %arg2[%c0_8, %c0_9] : memref<2x8xf32, #tpu.memory_space<vmem>>, vector<2x8xf32>
    %c0_10 = arith.constant 0 : index
    %c28 = arith.constant 28 : index
    %7 = vector.load %arg7[%c0_10, %c28] : memref<2x128xf32, #tpu.memory_space<vmem>>, vector<2x8xf32>
    tpu.vector_store %arg7[%c0_10, %c28], %6 {strides = array<i32>} : memref<2x128xf32, #tpu.memory_space<vmem>>, vector<2x8xf32>,
    %c0_11 = arith.constant 0 : index
    %c0_12 = arith.constant 0 : index
    %8 = vector.load %arg7[%c0_11, %c0_12] : memref<2x128xf32, #tpu.memory_space<vmem>>, vector<2x128xf32>
    %c0_13 = arith.constant 0 : index
    %c0_14 = arith.constant 0 : index
    %9 = vector.load %arg3[%c0_13, %c0_14] : memref<128x24xf32, #tpu.memory_space<vmem>>, vector<128x24xf32>
    %cst_15 = arith.constant dense<0.000000e+00> : vector<2x24xf32>
    %10 = tpu.matmul %8, %9, %cst_15 {dimension_numbers = #tpu.dot_dimension_numbers<[1], [0], [0], [1], [0, 0, 1, 1], [], []>} : vector<2x128xf32>, vector<128x24xf32>, vector<2x24xf32> -> vector<2x24xf32>
    %cst_16 = arith.constant 0.000000e+00 : f32
    %11 = vector.broadcast %cst_16 : f32 to vector<2x24xf32>
    %12 = arith.maximumf %10, %11 : vector<2x24xf32>
    %c0_17 = arith.constant 0 : index
    %c0_18 = arith.constant 0 : index
    %13 = vector.load %arg4[%c0_17, %c0_18] : memref<24x128xf32, #tpu.memory_space<vmem>>, vector<24x128xf32>
    %cst_19 = arith.constant dense<0.000000e+00> : vector<2x128xf32>
    %14 = tpu.matmul %12, %13, %cst_19 {dimension_numbers = #tpu.dot_dimension_numbers<[1], [0], [0], [1], [0, 0, 1, 1], [], []>} : vector<2x24xf32>, vector<24x128xf32>, vector<2x128xf32> -> vector<2x128xf32>
    %15 = arith.negf %14 : vector<2x128xf32>
    %16 = math.exp %15 : vector<2x128xf32>
    %cst_20 = arith.constant 1.000000e+00 : f32
    %17 = vector.broadcast %cst_20 : f32 to vector<2x128xf32>
    %18 = arith.addf %17, %16 : vector<2x128xf32>
    %19 = arith.divf %17, %18 : vector<2x128xf32>
    %c0_21 = arith.constant 0 : index
    %c0_22 = arith.constant 0 : index
    %20 = vector.load %arg5[%c0_21, %c0_22] : memref<2x128xf32, #tpu.memory_space<vmem>>, vector<2x128xf32>
    tpu.vector_store %arg5[%c0_21, %c0_22], %19 {strides = array<i32>} : memref<2x128xf32, #tpu.memory_space<vmem>>, vector<2x128xf32>,
    %21 = arith.mulf %8, %19 : vector<2x128xf32>
    %c0_23 = arith.constant 0 : index
    %c0_24 = arith.constant 0 : index
    %22 = vector.load %arg6[%c0_23, %c0_24] : memref<2x128xf32, #tpu.memory_space<vmem>>, vector<2x128xf32>
    tpu.vector_store %arg6[%c0_23, %c0_24], %21 {strides = array<i32>} : memref<2x128xf32, #tpu.memory_space<vmem>>, vector<2x128xf32>,
    return
  }
}

</mosaic_0001>

<llo_original>
// kernel: _lambda_.1
$region0: #{_lambda_.1}
  #allocation0 [shape = 'u32[]', space=smem, size = 0x4, offset = 0x4, fixed_abs, tag = 'smem constant byte address 0x4 - core index']
  #allocation1 [shape = 'u32[144,128]{1,0:T(1,128)}', space=vmem, size = 0x12000, scoped, tag = 'internal scratch']
  #allocation2 [shape = 'f32[2,128]{1,0:T(2,128)}', space=vmem, size = 0x400, scoped, tag = 'scratch operand']
  %s0 = inlined_call_operand.vmem [shape: f32[2,16], index: 0, kind: input, shape index: {}]
  %s1 = inlined_call_operand.vmem [shape: f32[2,12], index: 1, kind: input, shape index: {}]
  %s2 = inlined_call_operand.vmem [shape: f32[2,8], index: 2, kind: input, shape index: {}]
  %s3 = inlined_call_operand.hbm [shape: f32[128,24], index: 3, kind: input, shape index: {}]
  %s4 = inlined_call_operand.hbm [shape: f32[24,128], index: 4, kind: input, shape index: {}]
  %s5 = inlined_call_operand.vmem [shape: f32[2,128], index: 5, kind: output, shape index: {0}]
  %s6 = inlined_call_operand.vmem [shape: f32[2,128], index: 6, kind: output, shape index: {1}]
  %7 = xla_tuple %s5, %s6
  %s8 = sld [smem:[#allocation0]]
  $region46: #{_lambda_.1} parent=0
    _
  %s10 = ssub.s32 1, %s8
  %s11 = scalar_select 0, %s10, %s8
  $region1: #{_lambda_.1} parent=0
    #allocation3 [shape = 'u8[65536]{0}', space=vmem, size = 0x10000, scoped, tag = 'input window, operand 3, single buffered']
    #allocation4 [shape = 's32[1]{0}', space=sflag, size = 0x4, scoped, tag = 'scoped memory for _lambda_.1']
    #allocation5 [shape = 'u8[12288]{0}', space=vmem, size = 0x3000, scoped, tag = 'input window, operand 4, single buffered']
    #allocation6 [shape = 's32[1]{0}', space=sflag, size = 0x4, scoped, tag = 'scoped memory for _lambda_.1']
    %12 = vsyncpa [#allocation4], 0
    %13 = vsyncpa [#allocation6], 0
    // Predicated region
    $region2: #{_lambda_.1} parent=1 // pred_check
      _
    $region3: #{_lambda_.1} parent=1 // pred_check_branch
      %15 = sbr.rel (0) target = $region5
    $region4: #{_lambda_.1} parent=1 // pred_region
      _
    $region5: #{_lambda_.1} parent=1 // pred_fallthru
      _
    // Predicated region
    $region6: #{_lambda_.1} parent=1 // pred_check
      _
    $region7: #{_lambda_.1} parent=1 // pred_check_branch
      %17 = sbr.rel (0) target = $region9
    $region8: #{_lambda_.1} parent=1 // pred_region
      _
    $region9: #{_lambda_.1} parent=1 // pred_fallthru
      _
    // Predicated region
    $region10: #{_lambda_.1} parent=1 // pred_check
      _
    $region11: #{_lambda_.1} parent=1 // pred_check_branch
      %19 = sbr.rel (0) target = $region13
    $region12: #{_lambda_.1} parent=1 // pred_region
      _
    $region13: #{_lambda_.1} parent=1 // pred_fallthru
      _
    // Predicated region
    $region14: #{_lambda_.1} parent=1 // pred_check
      _
    $region15: #{_lambda_.1} parent=1 // pred_check_branch
      %21 = sbr.rel (0) target = $region17
    $region16: #{_lambda_.1} parent=1 // pred_region
      %s23 = ssub.s32 2048, 2048
      %24 = vsyncadd [#allocation4], %s23
      %s25 = sshll.u32 [#allocation3], 4
      %s26 = int_to_ptr.vmem [resolvable:$true] %s25
      %31 = dma.hbm_to_vmem [thread:$0]  %s3, 2048, %s26, [#allocation4], 128, 128, 8
    $region17: #{_lambda_.1} parent=1 // pred_fallthru
      _
    // Predicated region
    $region18: #{_lambda_.1} parent=1 // pred_check
      _
    $region19: #{_lambda_.1} parent=1 // pred_check_branch
      %33 = sbr.rel (0) target = $region21
    $region20: #{_lambda_.1} parent=1 // pred_region
      %s35 = ssub.s32 384, 384
      %36 = vsyncadd [#allocation6], %s35
      %s37 = sshll.u32 [#allocation5], 4
      %s38 = int_to_ptr.vmem [resolvable:$true] %s37
      %43 = dma.hbm_to_vmem [thread:$0]  %s4, 384, %s38, [#allocation6], 128, 128, 8
    $region21: #{_lambda_.1} parent=1 // pred_fallthru
      _
    // Predicated region
    $region22: #{_lambda_.1} parent=1 // pred_check
      _
    $region23: #{_lambda_.1} parent=1 // pred_check_branch
      %45 = sbr.rel (0) target = $region25
    $region24: #{_lambda_.1} parent=1 // pred_region
      %46 = dma.done [#allocation4], 2048
    $region25: #{_lambda_.1} parent=1 // pred_fallthru
      _
    // Predicated region
    $region26: #{_lambda_.1} parent=1 // pred_check
      _
    $region27: #{_lambda_.1} parent=1 // pred_check_branch
      %48 = sbr.rel (0) target = $region29
    $region28: #{_lambda_.1} parent=1 // pred_region
      %49 = dma.done [#allocation6], 384
    $region29: #{_lambda_.1} parent=1 // pred_fallthru
      _
    %50 = vst [vmem:[#allocation2] sm:$0x3] 0.0
    %v51 = vld [vmem:[%s0] sm:$0x3]
    %vm52 = vcmask 123904
    %53 = vst.msk [vmem:[#allocation2] sm:$0x3] %vm52, %v51
    %v54 = vld [vmem:[%s1] sm:$0x3]
    %56 = vrot.lane.b32.xlu0 %v54, 16
    %v57 = vpop.permute.xlu0 %56
    %vm59 = vcmask 222336
    %60 = vst.msk [vmem:[#allocation2] sm:$0x3] %vm59, %v57
    %v61 = vld [vmem:[%s2] sm:$0x3]
    %63 = vrot.lane.b32.xlu0 %v61, 28
    %v64 = vpop.permute.xlu0 %63
    %vm66 = vcmask 287968
    %67 = vst.msk [vmem:[#allocation2] sm:$0x3] %vm66, %v64
    %v68 = vld [vmem:[#allocation2] sm:$0x3]
    %v69 = vld [vmem:[#allocation3] sm:$0xff]
    %v70 = vld [vmem:[#allocation3 + $0x8] sm:$0xff]
    %v71 = vld [vmem:[#allocation3 + $0x10] sm:$0xff]
    %v72 = vld [vmem:[#allocation3 + $0x18] sm:$0xff]
    %v73 = vld [vmem:[#allocation3 + $0x20] sm:$0xff]
    %v74 = vld [vmem:[#allocation3 + $0x28] sm:$0xff]
    %v75 = vld [vmem:[#allocation3 + $0x30] sm:$0xff]
    %v76 = vld [vmem:[#allocation3 + $0x38] sm:$0xff]
    %v77 = vld [vmem:[#allocation3 + $0x40] sm:$0xff]
    %v78 = vld [vmem:[#allocation3 + $0x48] sm:$0xff]
    %v79 = vld [vmem:[#allocation3 + $0x50] sm:$0xff]
    %v80 = vld [vmem:[#allocation3 + $0x58] sm:$0xff]
    %v81 = vld [vmem:[#allocation3 + $0x60] sm:$0xff]
    %v82 = vld [vmem:[#allocation3 + $0x68] sm:$0xff]
    %v83 = vld [vmem:[#allocation3 + $0x70] sm:$0xff]
    %v84 = vld [vmem:[#allocation3 + $0x78] sm:$0xff]
    %85 = vmatprep.subr.mxu0 0.0
    %86 = vmatpush1.msra.mxu0 %v84
    %87 = vmatprep.subr.mxu0 0.0
    %88 = vmatpush1.msra.mxu0 %v83
    %89 = vmatprep.subr.mxu0 0.0
    %90 = vmatpush1.msra.mxu0 %v82
    %91 = vmatprep.subr.mxu0 0.0
    %92 = vmatpush1.msra.mxu0 %v81
    %93 = vmatprep.subr.mxu0 0.0
    %94 = vmatpush1.msra.mxu0 %v80
    %95 = vmatprep.subr.mxu0 0.0
    %96 = vmatpush1.msra.mxu0 %v79
    %97 = vmatprep.subr.mxu0 0.0
    %98 = vmatpush1.msra.mxu0 %v78
    %99 = vmatprep.subr.mxu0 0.0
    %100 = vmatpush1.msra.mxu0 %v77
    %101 = vmatprep.subr.mxu0 0.0
    %102 = vmatpush1.msra.mxu0 %v76
    %103 = vmatprep.subr.mxu0 0.0
    %104 = vmatpush1.msra.mxu0 %v75
    %105 = vmatprep.subr.mxu0 0.0
    %106 = vmatpush1.msra.mxu0 %v74
    %107 = vmatprep.subr.mxu0 0.0
    %108 = vmatpush1.msra.mxu0 %v73
    %109 = vmatprep.subr.mxu0 0.0
    %110 = vmatpush1.msra.mxu0 %v72
    %111 = vmatprep.subr.mxu0 0.0
    %112 = vmatpush1.msra.mxu0 %v71
    %113 = vmatprep.subr.mxu0 0.0
    %114 = vmatpush1.msra.mxu0 %v70
    %115 = vmatprep.subr.mxu0 0.0
    %116 = vmatpush1.msra.mxu0 %v69
    %117 = vmatprep.subr.mxu0 0.0
    %118 = vmatpush2.msra.mxu0 0.0
    %119 = vmatprep.subr.mxu0 0.0
    %120 = vmatpush2.msra.mxu0 0.0
    %121 = vmatprep.subr.mxu0 0.0
    %122 = vmatpush2.msra.mxu0 0.0
    %123 = vmatprep.subr.mxu0 0.0
    %124 = vmatpush2.msra.mxu0 0.0
    %125 = vmatprep.subr.mxu0 0.0
    %126 = vmatpush2.msra.mxu0 0.0
    %127 = vmatprep.subr.mxu0 0.0
    %128 = vmatpush2.msra.mxu0 0.0
    %129 = vmatprep.subr.mxu0 0.0
    %130 = vmatpush2.msra.mxu0 0.0
    %131 = vmatprep.subr.mxu0 0.0
    %132 = vmatpush2.msra.mxu0 0.0
    %133 = vmatprep.subr.mxu0 0.0
    %134 = vmatpush2.msra.mxu0 0.0
    %135 = vmatprep.subr.mxu0 0.0
    %136 = vmatpush2.msra.mxu0 0.0
    %137 = vmatprep.subr.mxu0 0.0
    %138 = vmatpush2.msra.mxu0 0.0
    %139 = vmatprep.subr.mxu0 0.0
    %140 = vmatpush2.msra.mxu0 0.0
    %141 = vmatprep.subr.mxu0 0.0
    %142 = vmatpush2.msra.mxu0 0.0
    %143 = vmatprep.subr.mxu0 0.0
    %144 = vmatpush2.msra.mxu0 0.0
    %145 = vmatprep.subr.mxu0 0.0
    %146 = vmatpush2.msra.mxu0 0.0
    %147 = vmatprep.subr.mxu0 0.0
    %148 = vmatpush2.msra.mxu0 0.0
    %149 = vmatprep.mubr.f32.mxu0 0.0
    %150 = vmatmul.mubr.f32.gmra.mxu0 %v68
    %v151 = vpop.f32.mrf.mxu0
    %v152 = vadd.f32 0.0, %v151
    %v153 = vpop.f32.mrf.mxu0
    %154 = vdwg.mxu0
    %v155 = vmax.f32 %v152, 0.0
    %v156 = vld [vmem:[#allocation5] sm:$0xff]
    %v157 = vld [vmem:[#allocation5 + $0x8] sm:$0xff]
    %v158 = vld [vmem:[#allocation5 + $0x10] sm:$0xff]
    %vm159 = vcmask 195584
    %v161 = vsel %vm159, %v155, 0
    %163 = vmatprep.subr.mxu0 0.0
    %164 = vmatpush1.msra.mxu0 0.0
    %165 = vmatprep.subr.mxu0 0.0
    %166 = vmatpush1.msra.mxu0 0.0
    %167 = vmatprep.subr.mxu0 0.0
    %168 = vmatpush1.msra.mxu0 0.0
    %169 = vmatprep.subr.mxu0 0.0
    %170 = vmatpush1.msra.mxu0 0.0
    %171 = vmatprep.subr.mxu0 0.0
    %172 = vmatpush1.msra.mxu0 0.0
    %173 = vmatprep.subr.mxu0 0.0
    %174 = vmatpush1.msra.mxu0 0.0
    %175 = vmatprep.subr.mxu0 0.0
    %176 = vmatpush1.msra.mxu0 0.0
    %177 = vmatprep.subr.mxu0 0.0
    %178 = vmatpush1.msra.mxu0 0.0
    %179 = vmatprep.subr.mxu0 0.0
    %180 = vmatpush1.msra.mxu0 0.0
    %181 = vmatprep.subr.mxu0 0.0
    %182 = vmatpush1.msra.mxu0 0.0
    %183 = vmatprep.subr.mxu0 0.0
    %184 = vmatpush1.msra.mxu0 0.0
    %185 = vmatprep.subr.mxu0 0.0
    %186 = vmatpush1.msra.mxu0 0.0
    %187 = vmatprep.subr.mxu0 0.0
    %188 = vmatpush1.msra.mxu0 0.0
    %189 = vmatprep.subr.mxu0 0.0
    %190 = vmatpush1.msra.mxu0 %v158
    %191 = vmatprep.subr.mxu0 0.0
    %192 = vmatpush1.msra.mxu0 %v157
    %193 = vmatprep.subr.mxu0 0.0
    %194 = vmatpush1.msra.mxu0 %v156
    %195 = vmatprep.subr.mxu0 0.0
    %196 = vmatpush2.msra.mxu0 0.0
    %197 = vmatprep.subr.mxu0 0.0
    %198 = vmatpush2.msra.mxu0 0.0
    %199 = vmatprep.subr.mxu0 0.0
    %200 = vmatpush2.msra.mxu0 0.0
    %201 = vmatprep.subr.mxu0 0.0
    %202 = vmatpush2.msra.mxu0 0.0
    %203 = vmatprep.subr.mxu0 0.0
    %204 = vmatpush2.msra.mxu0 0.0
    %205 = vmatprep.subr.mxu0 0.0
    %206 = vmatpush2.msra.mxu0 0.0
    %207 = vmatprep.subr.mxu0 0.0
    %208 = vmatpush2.msra.mxu0 0.0
    %209 = vmatprep.subr.mxu0 0.0
    %210 = vmatpush2.msra.mxu0 0.0
    %211 = vmatprep.subr.mxu0 0.0
    %212 = vmatpush2.msra.mxu0 0.0
    %213 = vmatprep.subr.mxu0 0.0
    %214 = vmatpush2.msra.mxu0 0.0
    %215 = vmatprep.subr.mxu0 0.0
    %216 = vmatpush2.msra.mxu0 0.0
    %217 = vmatprep.subr.mxu0 0.0
    %218 = vmatpush2.msra.mxu0 0.0
    %219 = vmatprep.subr.mxu0 0.0
    %220 = vmatpush2.msra.mxu0 0.0
    %221 = vmatprep.subr.mxu0 0.0
    %222 = vmatpush2.msra.mxu0 0.0
    %223 = vmatprep.subr.mxu0 0.0
    %224 = vmatpush2.msra.mxu0 0.0
    %225 = vmatprep.subr.mxu0 0.0
    %226 = vmatpush2.msra.mxu0 0.0
    %227 = vmatprep.mubr.f32.mxu0 0.0
    %228 = vmatmul.mubr.f32.gmra.mxu0 %v161
    %v229 = vpop.f32.mrf.mxu0
    %v230 = vadd.f32 0.0, %v229
    %v231 = vpop.f32.mrf.mxu0
    %232 = vdwg.mxu0
    %v233 = vxor.u32 %v230, 2147483648
    %v234 = vmul.f32 %v233, 1.442695
    %v235 = vpow.pop %v234
    %v236 = vadd.f32 %v235, 1.0
    %v237 = vrcp.pop %v236
    %v238 = vmul.f32 1.0, %v237
    %239 = vst [vmem:[%s5] sm:$0x3] %v238
    %v240 = vmul.f32 %v68, %v238
    %241 = vst [vmem:[%s6] sm:$0x3] %v240
    // Predicated region
    $region30: #{_lambda_.1} parent=1 // pred_check
      _
    $region31: #{_lambda_.1} parent=1 // pred_check_branch
      %243 = sbr.rel (0) target = $region33
    $region32: #{_lambda_.1} parent=1 // pred_region
      _
    $region33: #{_lambda_.1} parent=1 // pred_fallthru
      _
    // Predicated region
    $region34: #{_lambda_.1} parent=1 // pred_check
      _
    $region35: #{_lambda_.1} parent=1 // pred_check_branch
      %245 = sbr.rel (0) target = $region37
    $region36: #{_lambda_.1} parent=1 // pred_region
      _
    $region37: #{_lambda_.1} parent=1 // pred_fallthru
      _
    // Predicated region
    $region38: #{_lambda_.1} parent=1 // pred_check
      _
    $region39: #{_lambda_.1} parent=1 // pred_check_branch
      %247 = sbr.rel (0) target = $region41
    $region40: #{_lambda_.1} parent=1 // pred_region
      _
    $region41: #{_lambda_.1} parent=1 // pred_fallthru
      _
    // Predicated region
    $region42: #{_lambda_.1} parent=1 // pred_check
      _
    $region43: #{_lambda_.1} parent=1 // pred_check_branch
      %249 = sbr.rel (0) target = $region45
    $region44: #{_lambda_.1} parent=1 // pred_region
      _
    $region45: #{_lambda_.1} parent=1 // pred_fallthru
      _
    %250 = vsyncpa [#allocation4], 1
    %251 = vsyncpa [#allocation6], 1

</llo_original>
